<compile_context>
chip_gen: v5e
topology: v5e:2x2
jax: 0.10.0
libtpu: 0.0.40
codegen_flags: <defaults>
</compile_context>

<pallas_src>
import numpy as np
import jax
import jax.numpy as jnp
from jax.experimental import pallas as pl
from jax.experimental.pallas import tpu as pltpu

LANE = 128
SUBLANE = 8
VMEM_TILE_BUDGET = 36 * 1024 * 1024   # tile-footprint budget, safe on v7x (64 MiB physical)
VMEM_LIMIT_BYTES = 48 * 1024 * 1024


def _round_up(a: int, b: int) -> int:
    return ((a + b - 1) // b) * b


def _make_kernel(post_relu: bool):
    def kernel(a_ref, xw_ref, b_ref, o_ref, acc_ref):
        # Native-dtype MXU matmul (no per-step convert); f32 accumulation.
        prod = jnp.dot(a_ref[...], xw_ref[...], preferred_element_type=jnp.float32)

        # init-with-dot on the first reduction step, else accumulate
        @pl.when(pl.program_id(1) == 0)
        def _():
            acc_ref[...] = prod

        @pl.when(pl.program_id(1) != 0)
        def _():
            acc_ref[...] += prod

        # finalize: bias (+ relu), store in output dtype
        @pl.when(pl.program_id(1) == pl.num_programs(1) - 1)
        def _():
            out = acc_ref[...] + b_ref[...]
            if post_relu:
                out = jnp.maximum(out, 0.0)
            o_ref[...] = out.astype(o_ref.dtype)

    return kernel


def generate_hyperedge_features(x, edge_index, lin_w, bias,
                                edge_attr=None, lin_edge_w=None,
                                post_relu=False,
                                compute_dtype=jnp.float32,
                                tile_e=512, tile_n=1024):
    """BaseHypergraph.generate_hyperedge_features with the 'bgcn' / 'bgcn-relu' generator.

    x            : [N, C_in]  float node features
    edge_index   : [2, K]     concrete (numpy) bipartite edges node -> hyperedge
    lin_w        : [C_in, C_out]   (C_out == C_in in the module)
    bias         : [C_out]
    edge_attr    : optional [K, edge_dim]
    lin_edge_w   : optional [edge_dim, C_out]
    compute_dtype: dtype the incidence matrix and XW slab are streamed in. f32 (default) is
                   bit-faithful to the reference; bf16 uses the native MXU rate at ~3 sig-digit
                   precision (A stays exact for integer counts <= 256).
    """
    N, C_in = x.shape
    C_out = lin_w.shape[1]
    ei = np.asarray(edge_index)
    K = ei.shape[1]

    if K == 0:
        # matches the torch branch: zeros((0, in_channels))
        return jnp.zeros((0, C_out), dtype=x.dtype)

    E = int(ei[1].max()) + 1
    src = ei[0].astype(np.int64)
    dst = ei[1].astype(np.int64)

    has_edge = edge_attr is not None
    R = N + (K if has_edge else 0)     # reduction rows: node columns (+ per-edge columns)

    # bf16 is exact for integer multiplicities <= 256; fall back to f32 otherwise.
    if jnp.dtype(compute_dtype) == jnp.bfloat16:
        _, cnt = np.unique(dst * np.int64(N) + src, return_counts=True)
        if int(cnt.max()) > 256:
            compute_dtype = jnp.float32

    compute_dtype = jnp.dtype(compute_dtype)
    a_itemsize = compute_dtype.itemsize
    xw_itemsize = compute_dtype.itemsize
    out_itemsize = jnp.dtype(x.dtype).itemsize

    # -------- lane-dense padded geometry --------------------------------------------------
    cout_pad = _round_up(C_out, LANE)
    r_full = _round_up(R, LANE)

    # Prefer a fully-resident XW (single reduction step) when it fits the tile budget:
    # eliminates re-streaming XW once per E-tile.
    resident_xw_bytes = 2 * r_full * cout_pad * xw_itemsize             # double-buffer alloc
    per_e_row_res = 2 * r_full * a_itemsize + cout_pad * 4 + 2 * cout_pad * out_itemsize
    if resident_xw_bytes + 256 * per_e_row_res + 2 * cout_pad * 4 <= VMEM_TILE_BUDGET:
        tile_n = r_full
    else:
        tile_n = max(LANE, min(_round_up(tile_n, LANE), r_full))
    r_pad = _round_up(R, tile_n)

    # Budget tile_e so  2*A_tile + 2*XW_tile + acc + 2*out_tile + bias  stays under budget.
    per_e_row = 2 * tile_n * a_itemsize + cout_pad * 4 + 2 * cout_pad * out_itemsize
    fixed = 2 * tile_n * cout_pad * xw_itemsize + 2 * cout_pad * 4
    max_tile_e = max(SUBLANE, ((VMEM_TILE_BUDGET - fixed) // per_e_row) // SUBLANE * SUBLANE)
    tile_e = max(SUBLANE, min(tile_e, max_tile_e))

    e_pad8 = _round_up(E, SUBLANE)
    if tile_e >= e_pad8:
        if e_pad8 >= 2 * SUBLANE:
            # split so the "parallel" E axis gives both v7x TensorCores work
            tile_e = _round_up((e_pad8 + 1) // 2, SUBLANE)
        else:
            tile_e = e_pad8
    e_pad = _round_up(E, tile_e)

    # -------- host-built dense incidence (edge_index is concrete; no XLA scatter) ----------
    # A[e, n]     = #edges n -> e              (node part)
    # A[e, N + k] = 1 if dst_k == e            (edge_attr part)
    A_np = np.zeros((e_pad, r_pad), dtype=np.float32)
    np.add.at(A_np, (dst, src), 1.0)
    if has_edge:
        A_np[dst, N + np.arange(K)] += 1.0
    A = jnp.asarray(A_np, dtype=compute_dtype)

    # -------- XW precompute (A @ (X @ W) re-association); f32 matmuls, then cast ------------
    xw_nodes = jnp.asarray(x, jnp.float32) @ jnp.asarray(lin_w, jnp.float32)
    XW = jnp.zeros((r_pad, cout_pad), jnp.float32)
    XW = XW.at[:N, :C_out].set(xw_nodes)
    if has_edge:
        xw_edges = jnp.asarray(edge_attr, jnp.float32) @ jnp.asarray(lin_edge_w, jnp.float32)
        XW = XW.at[N:N + K, :C_out].set(xw_edges)
    XW = XW.astype(compute_dtype)

    b = jnp.zeros((1, cout_pad), jnp.float32).at[0, :C_out].set(
        jnp.asarray(bias, jnp.float32))

    # -------- pallas_call -------------------------------------------------------------------
    grid = (e_pad // tile_e, r_pad // tile_n)
    n_e_tiles, n_k_steps = grid
    kernel = _make_kernel(post_relu)

    flops = 2 * e_pad * r_pad * cout_pad
    xw_passes = 1 if n_k_steps == 1 else n_e_tiles     # resident XW => streamed once
    bytes_accessed = (e_pad * r_pad * a_itemsize
                      + r_pad * cout_pad * xw_itemsize * xw_passes
                      + cout_pad * 4
                      + e_pad * cout_pad * out_itemsize)

    out = pl.pallas_call(
        kernel,
        out_shape=jax.ShapeDtypeStruct((e_pad, cout_pad), x.dtype),
        grid_spec=pltpu.PrefetchScalarGridSpec(
            num_scalar_prefetch=0,
            grid=grid,
            in_specs=[
                pl.BlockSpec((tile_e, tile_n), lambda i, k: (i, k)),    # A tile (streamed)
                pl.BlockSpec((tile_n, cout_pad), lambda i, k: (k, 0)),  # XW (resident if 1 step)
                pl.BlockSpec((1, cout_pad), lambda i, k: (0, 0)),       # bias (resident)
            ],
            out_specs=pl.BlockSpec((tile_e, cout_pad), lambda i, k: (i, 0)),
            scratch_shapes=[pltpu.VMEM((tile_e, cout_pad), jnp.float32)],
        ),
        compiler_params=pltpu.CompilerParams(
            dimension_semantics=("parallel", "arbitrary"),
            vmem_limit_bytes=VMEM_LIMIT_BYTES,
        ),
        cost_estimate=pl.CostEstimate(
            flops=flops, transcendentals=0, bytes_accessed=bytes_accessed),
    )(A, XW, b)

    return out[:E, :C_out].astype(x.dtype)


def _reference(x, edge_index, lin_w, bias, edge_attr=None, lin_edge_w=None, post_relu=False):
    ei = np.asarray(edge_index)
    if ei.shape[1] == 0:
        return jnp.zeros((0, lin_w.shape[1]), x.dtype)
    x_src = x @ lin_w
    msg = x_src[jnp.asarray(ei[0])]
    if edge_attr is not None:
        msg = msg + edge_attr @ lin_edge_w
    E = int(ei[1].max()) + 1
    out = jnp.zeros((E, lin_w.shape[1]), x.dtype).at[jnp.asarray(ei[1])].add(msg)
    out = out + bias[None, :]
    if post_relu:
        out = jnp.maximum(out, 0.0)
    return out


def _glorot(key, fan_in, fan_out):
    limit = np.sqrt(6.0 / (fan_in + fan_out))
    return jax.random.uniform(key, (fan_in, fan_out), jnp.float32, -limit, limit)


if __name__ == "__main__":
    # Small shapes consistent with the module: N nodes, C=in_channels, K bipartite edges.
    N, C, K, EDGE_DIM = 16, 32, 24, 32

    key = jax.random.PRNGKey(0)
    kx, ks, kd, kw, kwe, kea = jax.random.split(key, 6)

    x = jax.random.normal(kx, (N, C), jnp.float32)
    src = jax.random.randint(ks, (K,), 0, N)
    dst = jax.random.randint(kd, (K,), 0, 8)
    dst = dst.at[-1].set(7)                                     # ensure num_hyperedges = 8
    edge_index = np.stack([np.asarray(src), np.asarray(dst)])   # [2, K], concrete

    # Parameters (deterministic, matching BipartiteGCNConv init):
    lin_w = _glorot(kw, C, C)                    # self.lin: glorot, no bias
    bias = jnp.zeros((C,), jnp.float32)          # zeros(self.bias)
    lin_edge_w = _glorot(kwe, EDGE_DIM, C)       # self.lin_edge: glorot, no bias
    edge_attr = jax.random.normal(kea, (K, EDGE_DIM), jnp.float32)

    # --- default BaseHypergraph('bgcn', edge_dim=None) path: no edge_attr, no relu ---
    out = generate_hyperedge_features(x, edge_index, lin_w, bias)
    out = jax.block_until_ready(out)
    ref = _reference(x, edge_index, lin_w, bias)
    assert out.shape == ref.shape
    np.testing.assert_allclose(np.asarray(out), np.asarray(ref), rtol=1e-5, atol=1e-5)

    # --- 'bgcn-relu' path with edge_attr (edge_dim=EDGE_DIM), f32 compute ---
    out2 = generate_hyperedge_features(x, edge_index, lin_w, bias,
                                       edge_attr=edge_attr, lin_edge_w=lin_edge_w,
                                       post_relu=True)
    out2 = jax.block_until_ready(out2)
    ref2 = _reference(x, edge_index, lin_w, bias, edge_attr, lin_edge_w, post_relu=True)
    np.testing.assert_allclose(np.asarray(out2), np.asarray(ref2), rtol=1e-5, atol=1e-5)

    # --- bf16 fast path (native MXU rate): looser tolerance, documented trade-off ---
    out3 = generate_hyperedge_features(x, edge_index, lin_w, bias,
                                       edge_attr=edge_attr, lin_edge_w=lin_edge_w,
                                       post_relu=True, compute_dtype=jnp.bfloat16)
    out3 = jax.block_until_ready(out3)
    np.testing.assert_allclose(np.asarray(out3), np.asarray(ref2), rtol=3e-2, atol=3e-2)

    # --- empty edge_index branch ---
    empty = generate_hyperedge_features(x, np.zeros((2, 0), np.int32), lin_w, bias)
    assert empty.shape == (0, C)

    print("KERNEL_OK")
</pallas_src>

<mosaic_0001>
module attributes {stable_mosaic.version = 11 : i64} {
  func.func @kernel(%arg0: i32, %arg1: i32, %arg2: memref<8x128xf32, #tpu.memory_space<vmem>>, %arg3: memref<128x128xf32, #tpu.memory_space<vmem>>, %arg4: memref<1x128xf32, #tpu.memory_space<vmem>>, %arg5: memref<8x128xf32, #tpu.memory_space<vmem>>, %arg6: memref<8x128xf32, #tpu.memory_space<vmem>>) attributes {dimension_semantics = [#tpu.dimension_semantics<parallel>, #tpu.dimension_semantics<arbitrary>], iteration_bounds = array<i64: 1, 1>, scalar_prefetch = 0 : i64, scratch_operands = 1 : i64, tpu.core_type = #tpu.core_type<tc>, window_params = [{transform_indices = @transform_0, window_bounds = array<i64: 8, 128>}, {transform_indices = @transform_1, window_bounds = array<i64: 128, 128>}, {pipeline_mode = #tpu.pipeline_mode<synchronous>, transform_indices = @transform_2, window_bounds = array<i64: 1, 128>}, {transform_indices = @transform_3, window_bounds = array<i64: 8, 128>}]} {
    %c0 = arith.constant 0 : index
    %c0_0 = arith.constant 0 : index
    %0 = vector.load %arg2[%c0, %c0_0] : memref<8x128xf32, #tpu.memory_space<vmem>>, vector<8x128xf32>
    %c0_1 = arith.constant 0 : index
    %c0_2 = arith.constant 0 : index
    %1 = vector.load %arg3[%c0_1, %c0_2] : memref<128x128xf32, #tpu.memory_space<vmem>>, vector<128x128xf32>
    %cst = arith.constant dense<0.000000e+00> : vector<8x128xf32>
    %2 = tpu.matmul %0, %1, %cst {dimension_numbers = #tpu.dot_dimension_numbers<[1], [0], [0], [1], [0, 0, 1, 1], [], []>} : vector<8x128xf32>, vector<128x128xf32>, vector<8x128xf32> -> vector<8x128xf32>
    %c0_i32 = arith.constant 0 : i32
    %3 = arith.cmpi eq, %arg1, %c0_i32 : i32
    %4 = arith.extui %3 : i1 to i32
    %c0_i32_3 = arith.constant 0 : i32
    %5 = arith.cmpi ne, %4, %c0_i32_3 : i32
    scf.if %5 {
      %c0_8 = arith.constant 0 : index
      %c0_9 = arith.constant 0 : index
      %12 = vector.load %arg6[%c0_8, %c0_9] : memref<8x128xf32, #tpu.memory_space<vmem>>, vector<8x128xf32>
      tpu.vector_store %arg6[%c0_8, %c0_9], %2 {strides = array<i32>} : memref<8x128xf32, #tpu.memory_space<vmem>>, vector<8x128xf32>,
    } else {
    }
    %c0_i32_4 = arith.constant 0 : i32
    %6 = arith.cmpi ne, %arg1, %c0_i32_4 : i32
    %7 = arith.extui %6 : i1 to i32
    %c0_i32_5 = arith.constant 0 : i32
    %8 = arith.cmpi ne, %7, %c0_i32_5 : i32
    scf.if %8 {
      %c0_8 = arith.constant 0 : index
      %c0_9 = arith.constant 0 : index
      %12 = vector.load %arg6[%c0_8, %c0_9] : memref<8x128xf32, #tpu.memory_space<vmem>>, vector<8x128xf32>
      %13 = arith.addf %12, %2 : vector<8x128xf32>
      %c0_10 = arith.constant 0 : index
      %c0_11 = arith.constant 0 : index
      %14 = vector.load %arg6[%c0_10, %c0_11] : memref<8x128xf32, #tpu.memory_space<vmem>>, vector<8x128xf32>
      tpu.vector_store %arg6[%c0_10, %c0_11], %13 {strides = array<i32>} : memref<8x128xf32, #tpu.memory_space<vmem>>, vector<8x128xf32>,
    } else {
    }
    %c0_i32_6 = arith.constant 0 : i32
    %9 = arith.cmpi eq, %arg1, %c0_i32_6 : i32
    %10 = arith.extui %9 : i1 to i32
    %c0_i32_7 = arith.constant 0 : i32
    %11 = arith.cmpi ne, %10, %c0_i32_7 : i32
    scf.if %11 {
      %c0_8 = arith.constant 0 : index
      %c0_9 = arith.constant 0 : index
      %12 = vector.load %arg6[%c0_8, %c0_9] : memref<8x128xf32, #tpu.memory_space<vmem>>, vector<8x128xf32>
      %c0_10 = arith.constant 0 : index
      %c0_11 = arith.constant 0 : index
      %13 = vector.load %arg4[%c0_10, %c0_11] : memref<1x128xf32, #tpu.memory_space<vmem>>, vector<1x128xf32>
      %14 = vector.broadcast %13 : vector<1x128xf32> to vector<8x128xf32>
      %15 = arith.addf %12, %14 : vector<8x128xf32>
      %c0_12 = arith.constant 0 : index
      %c0_13 = arith.constant 0 : index
      %16 = vector.load %arg5[%c0_12, %c0_13] : memref<8x128xf32, #tpu.memory_space<vmem>>, vector<8x128xf32>
      tpu.vector_store %arg5[%c0_12, %c0_13], %15 {strides = array<i32>} : memref<8x128xf32, #tpu.memory_space<vmem>>, vector<8x128xf32>,
    } else {
    }
    return
  }
  func.func @transform_0(%arg0: i32, %arg1: i32) -> (i32, i32) {
    %c0_i32 = arith.constant 0 : i32
    return %arg0, %arg1 : i32, i32
  }
  func.func @transform_1(%arg0: i32, %arg1: i32) -> (i32, i32) {
    %c0_i32 = arith.constant 0 : i32
    %c0_i32_0 = arith.constant 0 : i32
    return %arg1, %c0_i32 : i32, i32
  }
  func.func @transform_2(%arg0: i32, %arg1: i32) -> (i32, i32) {
    %c0_i32 = arith.constant 0 : i32
    %c0_i32_0 = arith.constant 0 : i32
    %c0_i32_1 = arith.constant 0 : i32
    return %c0_i32, %c0_i32_0 : i32, i32
  }
  func.func @transform_3(%arg0: i32, %arg1: i32) -> (i32, i32) {
    %c0_i32 = arith.constant 0 : i32
    %c0_i32_0 = arith.constant 0 : i32
    return %arg0, %c0_i32 : i32, i32
  }
}

</mosaic_0001>

<llo_original>
// kernel: tpu_custom_call.1
$region0: #{tpu_custom_call.1}
  #allocation0 [shape = 'u32[]', space=smem, size = 0x4, offset = 0x4, fixed_abs, tag = 'smem constant byte address 0x4 - core index']
  #allocation1 [shape = 'u32[72,128]{1,0:T(1,128)}', space=vmem, size = 0x9000, scoped, tag = 'internal scratch']
  #allocation2 [shape = 'f32[8,128]{1,0:T(8,128)}', space=vmem, size = 0x1000, scoped, tag = 'scratch operand']
  %s0 = inlined_call_operand.hbm [shape: f32[8,128], index: 0, kind: input, shape index: {}]
  %s1 = inlined_call_operand.hbm [shape: f32[128,128], index: 1, kind: input, shape index: {}]
  %s2 = inlined_call_operand.vmem [shape: f32[1,128], index: 2, kind: input, shape index: {}]
  %s3 = inlined_call_operand.hbm [shape: f32[8,128], index: 3, kind: output, shape index: {}]
  %s4 = sld [smem:[#allocation0]]
  $region42: #{tpu_custom_call.1} parent=0
    _
  %s6 = ssub.s32 1, %s4
  %s7 = scalar_select 0, %s6, %s4
  $region1: #{tpu_custom_call.1} parent=0
    #allocation3 [shape = 'u8[4096]{0}', space=vmem, size = 0x1000, scoped, tag = 'input window, operand 0, single buffered']
    #allocation4 [shape = 's32[1]{0}', space=sflag, size = 0x4, scoped, tag = 'scoped memory for tpu_custom_call.1']
    #allocation5 [shape = 's32[1]{0}', space=sflag, size = 0x4, scoped, tag = 'scoped memory for tpu_custom_call.1']
    #allocation6 [shape = 'u8[65536]{0}', space=vmem, size = 0x10000, scoped, tag = 'input window, operand 1, single buffered']
    #allocation7 [shape = 's32[1]{0}', space=sflag, size = 0x4, scoped, tag = 'scoped memory for tpu_custom_call.1']
    #allocation8 [shape = 'u8[4096]{0}', space=vmem, size = 0x1000, scoped, tag = 'output window, operand 0, single buffered']
    %8 = vsyncpa [#allocation4], 0
    %9 = vsyncpa [#allocation7], 0
    %10 = vsyncpa [#allocation5], 0
    // Predicated region
    $region2: #{tpu_custom_call.1} parent=1 // pred_check
      _
    $region3: #{tpu_custom_call.1} parent=1 // pred_check_branch
      %12 = sbr.rel (0) target = $region5
    $region4: #{tpu_custom_call.1} parent=1 // pred_region
      %14 = vsyncadd [#allocation4], 0
      %s16 = sshll.u32 %s0, 4
      %s17 = int_to_ptr.hbm [resolvable:$true] %s16
      %s18 = sshll.u32 [#allocation3], 4
      %s19 = int_to_ptr.vmem [resolvable:$true] %s18
      %21 = dma.hbm_to_vmem [thread:$0]  %s17, 128, %s19, [#allocation4]
    $region5: #{tpu_custom_call.1} parent=1 // pred_fallthru
      _
    // Predicated region
    $region6: #{tpu_custom_call.1} parent=1 // pred_check
      _
    $region7: #{tpu_custom_call.1} parent=1 // pred_check_branch
      %23 = sbr.rel (0) target = $region9
    $region8: #{tpu_custom_call.1} parent=1 // pred_region
      %25 = vsyncadd [#allocation7], 0
      %s26 = sshll.u32 %s1, 4
      %s27 = int_to_ptr.hbm [resolvable:$true] %s26
      %s28 = sshll.u32 [#allocation6], 4
      %s29 = int_to_ptr.vmem [resolvable:$true] %s28
      %34 = dma.hbm_to_vmem [thread:$0]  %s27, 2048, %s29, [#allocation7], 128, 128, 8
    $region9: #{tpu_custom_call.1} parent=1 // pred_fallthru
      _
    // Predicated region
    $region10: #{tpu_custom_call.1} parent=1 // pred_check
      _
    $region11: #{tpu_custom_call.1} parent=1 // pred_check_branch
      %36 = sbr.rel (0) target = $region13
    $region12: #{tpu_custom_call.1} parent=1 // pred_region
      _
    $region13: #{tpu_custom_call.1} parent=1 // pred_fallthru
      _
    // Predicated region
    $region14: #{tpu_custom_call.1} parent=1 // pred_check
      _
    $region15: #{tpu_custom_call.1} parent=1 // pred_check_branch
      %38 = sbr.rel (0) target = $region17
    $region16: #{tpu_custom_call.1} parent=1 // pred_region
      %40 = dma.done [#allocation4], 128
    $region17: #{tpu_custom_call.1} parent=1 // pred_fallthru
      _
    // Predicated region
    $region18: #{tpu_custom_call.1} parent=1 // pred_check
      _
    $region19: #{tpu_custom_call.1} parent=1 // pred_check_branch
      %42 = sbr.rel (0) target = $region21
    $region20: #{tpu_custom_call.1} parent=1 // pred_region
      %44 = dma.done [#allocation7], 2048
    $region21: #{tpu_custom_call.1} parent=1 // pred_fallthru
      _
    %v45 = vld [vmem:[#allocation3] sm:$0xff]
    %v46 = vld [vmem:[#allocation6] sm:$0xff]
    %v47 = vld [vmem:[#allocation6 + $0x8] sm:$0xff]
    %v48 = vld [vmem:[#allocation6 + $0x10] sm:$0xff]
    %v49 = vld [vmem:[#allocation6 + $0x18] sm:$0xff]
    %v50 = vld [vmem:[#allocation6 + $0x20] sm:$0xff]
    %v51 = vld [vmem:[#allocation6 + $0x28] sm:$0xff]
    %v52 = vld [vmem:[#allocation6 + $0x30] sm:$0xff]
    %v53 = vld [vmem:[#allocation6 + $0x38] sm:$0xff]
    %v54 = vld [vmem:[#allocation6 + $0x40] sm:$0xff]
    %v55 = vld [vmem:[#allocation6 + $0x48] sm:$0xff]
    %v56 = vld [vmem:[#allocation6 + $0x50] sm:$0xff]
    %v57 = vld [vmem:[#allocation6 + $0x58] sm:$0xff]
    %v58 = vld [vmem:[#allocation6 + $0x60] sm:$0xff]
    %v59 = vld [vmem:[#allocation6 + $0x68] sm:$0xff]
    %v60 = vld [vmem:[#allocation6 + $0x70] sm:$0xff]
    %v61 = vld [vmem:[#allocation6 + $0x78] sm:$0xff]
    %62 = vmatpush.msra.mxu0 %v61
    %63 = vmatpush.msra.mxu0 %v60
    %64 = vmatpush.msra.mxu0 %v59
    %65 = vmatpush.msra.mxu0 %v58
    %66 = vmatpush.msra.mxu0 %v57
    %67 = vmatpush.msra.mxu0 %v56
    %68 = vmatpush.msra.mxu0 %v55
    %69 = vmatpush.msra.mxu0 %v54
    %70 = vmatpush.msra.mxu0 %v53
    %71 = vmatpush.msra.mxu0 %v52
    %72 = vmatpush.msra.mxu0 %v51
    %73 = vmatpush.msra.mxu0 %v50
    %74 = vmatpush.msra.mxu0 %v49
    %75 = vmatpush.msra.mxu0 %v48
    %76 = vmatpush.msra.mxu0 %v47
    %77 = vmatpush.msra.mxu0 %v46
    %78 = vmatmul.f32.gmra.mxu0 %v45
    %v79 = vpop.f32.mrf.mxu0
    %v80 = vadd.f32 0.0, %v79
    %81 = vdwg.mxu0
    %p82 = scmp.eq.s32.totalorder 0, 0
    // Predicated region
    $region22: #{tpu_custom_call.1} parent=1 // pred_check
      %p83 = pneg %p82
    $region23: #{tpu_custom_call.1} parent=1 // pred_check_branch
      %85 = sbr.rel (%p83) target = $region25
    $region24: #{tpu_custom_call.1} parent=1 // pred_region
      %86 = vst [vmem:[#allocation2] sm:$0xff] %v80
    $region25: #{tpu_custom_call.1} parent=1 // pred_fallthru
      _
    %p87 = scmp.ne.s32.totalorder 0, 0
    // Predicated region
    $region26: #{tpu_custom_call.1} parent=1 // pred_check
      %p88 = pneg %p87
    $region27: #{tpu_custom_call.1} parent=1 // pred_check_branch
      %90 = sbr.rel (%p88) target = $region29
    $region28: #{tpu_custom_call.1} parent=1 // pred_region
      %v91 = vld [vmem:[#allocation2] sm:$0xff]
      %v92 = vadd.f32 %v91, %v80
      %93 = vst [vmem:[#allocation2] sm:$0xff] %v92
    $region29: #{tpu_custom_call.1} parent=1 // pred_fallthru
      _
    // Predicated region
    $region30: #{tpu_custom_call.1} parent=1 // pred_check
      %p94 = pneg %p82
    $region31: #{tpu_custom_call.1} parent=1 // pred_check_branch
      %96 = sbr.rel (%p94) target = $region33
    $region32: #{tpu_custom_call.1} parent=1 // pred_region
      %v97 = vld [vmem:[#allocation2] sm:$0xff]
      %v98 = vld [vmem:[%s2] sm:$0x1]
      %v100 = vperm.slane %v98, 0
      %v102 = vadd.f32 %v97, %v100
      %103 = vst [vmem:[#allocation8] sm:$0xff] %v102
    $region33: #{tpu_custom_call.1} parent=1 // pred_fallthru
      _
    // Predicated region
    $region34: #{tpu_custom_call.1} parent=1 // pred_check
      _
    $region35: #{tpu_custom_call.1} parent=1 // pred_check_branch
      %105 = sbr.rel (0) target = $region37
    $region36: #{tpu_custom_call.1} parent=1 // pred_region
      %107 = vsyncadd [#allocation5], 0
      %s109 = sshll.u32 [#allocation8], 4
      %s110 = int_to_ptr.vmem [resolvable:$true] %s109
      %s111 = sshll.u32 %s3, 4
      %s112 = int_to_ptr.hbm [resolvable:$true] %s111
      %114 = dma.vmem_to_hbm [thread:$0]  %s110, 128, %s112, [#allocation5]
    $region37: #{tpu_custom_call.1} parent=1 // pred_fallthru
      _
    // Predicated region
    $region38: #{tpu_custom_call.1} parent=1 // pred_check
      _
    $region39: #{tpu_custom_call.1} parent=1 // pred_check_branch
      %116 = sbr.rel (0) target = $region41
    $region40: #{tpu_custom_call.1} parent=1 // pred_region
      %118 = dma.done [#allocation5], 128
    $region41: #{tpu_custom_call.1} parent=1 // pred_fallthru
      _
    %119 = vsyncpa [#allocation4], 1
    %120 = vsyncpa [#allocation7], 1
    %121 = vsyncpa [#allocation5], 1

</llo_original>
